<compile_context>
chip_gen: v7x
topology: tpu7x:2x2x1
jax: 0.10.0
libtpu: 0.0.40
codegen_flags: <defaults>
</compile_context>

<pallas_src>
import math
import jax
import jax.numpy as jnp
from jax.experimental import pallas as pl
from jax.experimental.pallas import tpu as pltpu

# ---- circle-loss hyper-parameters (match the PyTorch module) ---------------
M_MARGIN = 0.25
GAMMA = 128.0
MOMENTUM = 0.2
LOSS_DIV = 18.0
NEG_MASK = -99999.0       # same magnitude as the PyTorch mask offset
NEG_INIT = -3.0e38        # init for the running maxima
OUT_LANES = 128           # lane-dense output width
COL_SENTINEL = -2.0       # marks padded / out-of-range columns (labels are >= -1)
ROW_SENTINEL = -3.0       # marks padded rows


def _round_up(x, m):
    return (x + m - 1) // m * m


def _cdiv(a, b):
    return -(-a // b)


# ---------------------------------------------------------------------------
# Fused circle-loss kernel (both losses, K-tiled online weighted logsumexp,
# per-row-tile K-range skipping).
# ---------------------------------------------------------------------------
def _fused_circle_kernel(steps_ref, labrow_ref,                 # scalar prefetch (SMEM)
                         q_ref, mem_ref, rowmeta_ref, colmeta_ref,  # VMEM inputs
                         out_ref,                               # VMEM output
                         mp_ref, sp_ref, mn_ref, sn_ref):       # VMEM scratch
    r = pl.program_id(0)
    kk = pl.program_id(1)
    steps = steps_ref[r]                     # number of K-steps this row tile needs

    @pl.when(kk < steps)
    def _active():
        @pl.when(kk == 0)
        def _init():
            mp_ref[...] = jnp.full(mp_ref.shape, NEG_INIT, jnp.float32)
            mn_ref[...] = jnp.full(mn_ref.shape, NEG_INIT, jnp.float32)
            sp_ref[...] = jnp.zeros(sp_ref.shape, jnp.float32)
            sn_ref[...] = jnp.zeros(sn_ref.shape, jnp.float32)

        # --- similarity tile on the MXU: (TR, D) x (TK, D)^T -> (TR, TK) ----
        sim = jax.lax.dot_general(q_ref[...], mem_ref[...],
                                  (((1,), (1,)), ((), ())),
                                  preferred_element_type=jnp.float32)

        # --- per-tile metadata (selected via BlockSpec, no per-element is_q2)
        row_label = rowmeta_ref[:, 0:1]      # (TR, 1)
        u_row = rowmeta_ref[:, 1:2]          # (TR, 1)
        col_label = colmeta_ref[0:1, :]      # (1, TK)  queue OR center labels
        u_col = colmeta_ref[1:2, :]          # (1, TK)  0.5*uncer_mem OR 0

        valid = col_label != COL_SENTINEL    # (1, TK)  padded columns excluded
        is_pos = row_label == col_label      # (TR, TK)

        # --- fused circle-loss logits straight from sim ----------------------
        logit_p = -GAMMA * jnp.maximum((1.0 + M_MARGIN) - sim, 0.0) * (sim - (1.0 - M_MARGIN))
        logit_n = GAMMA * jnp.maximum(sim + M_MARGIN, 0.0) * (sim - M_MARGIN)
        v = jnp.where(is_pos, logit_p, logit_n)
        v = jnp.where(valid, v, NEG_MASK)

        # --- logsumexp weight: w = u_row + u_col (exp_variance or 1) ---------
        w = u_row + u_col

        # --- online weighted logsumexp over K; separate pos / neg maxima -----
        mp_tile = jnp.max(jnp.where(is_pos, v, NEG_MASK), axis=1, keepdims=True)
        mn_tile = jnp.max(jnp.where(is_pos, NEG_MASK, v), axis=1, keepdims=True)
        mp_new = jnp.maximum(mp_ref[...], mp_tile)
        mn_new = jnp.maximum(mn_ref[...], mn_tile)

        e = w * jnp.exp(v - jnp.where(is_pos, mp_new, mn_new))   # arg <= 0 always
        sp_tile = jnp.sum(jnp.where(is_pos, e, 0.0), axis=1, keepdims=True)
        sn_tile = jnp.sum(jnp.where(is_pos, 0.0, e), axis=1, keepdims=True)

        sp_ref[...] = sp_ref[...] * jnp.exp(mp_ref[...] - mp_new) + sp_tile
        sn_ref[...] = sn_ref[...] * jnp.exp(mn_ref[...] - mn_new) + sn_tile
        mp_ref[...] = mp_new
        mn_ref[...] = mn_new

        @pl.when(kk == steps - 1)
        def _finalize():
            lse_p = mp_ref[...] + jnp.log(sp_ref[...] + 1e-30)
            lse_n = mn_ref[...] + jnp.log(sn_ref[...] + 1e-30)
            val = jnp.logaddexp(lse_p + lse_n, 0.0)              # softplus
            out_ref[...] = jnp.broadcast_to(val, out_ref.shape).astype(out_ref.dtype)


# ---------------------------------------------------------------------------
# Host wrapper: pad/tile, one pallas_call for both losses
# ---------------------------------------------------------------------------
def fused_circle_losses(q1n, q2n, memory_pad, K, sour_numclass,
                        pseudo_label1, mem_label, pseudo_label2, center_label,
                        uncer, uncer_mem):
    """Returns (loss_q1, loss_q2), each already averaged and divided by 18."""
    B, D = q1n.shape
    K_pad, D_pad = memory_pad.shape

    # ---- row tiling: each row tile is pure q1 or pure q2 --------------------
    if B <= 128:
        B_pad = _round_up(B, 8)
        TR = B_pad
    else:
        B_pad = _round_up(B, 128)
        TR = 128
    R_pad = 2 * B_pad
    n_half = B_pad // TR                      # row tiles per loss

    # ---- column tiling: TK multiple of 128 dividing K_pad, tile <= ~4 MiB ---
    tk_cap = max(128, min(1024, (4 * 1024 * 1024) // (D_pad * 4)))
    d_blocks = K_pad // 128
    TK = 128
    for mult in range(d_blocks, 0, -1):
        if d_blocks % mult == 0 and mult * 128 <= tk_cap:
            TK = mult * 128
            break
    k_steps = K_pad // TK

    # ---- operands ------------------------------------------------------------
    def padrows(x, n, fill):
        pad = jnp.full((n - x.shape[0],) + x.shape[1:], fill, x.dtype)
        return jnp.concatenate([x, pad], axis=0)

    q_all = jnp.concatenate([
        padrows(jnp.pad(q1n.astype(jnp.float32), ((0, 0), (0, D_pad - D))), B_pad, 0.0),
        padrows(jnp.pad(q2n.astype(jnp.float32), ((0, 0), (0, D_pad - D))), B_pad, 0.0),
    ], axis=0)                                                    # (R_pad, D_pad) f32

    have_u = uncer is not None
    u_q1 = (0.5 * uncer.astype(jnp.float32)) if have_u else jnp.ones((B,), jnp.float32)
    lab_rows = jnp.concatenate([
        padrows(pseudo_label1.astype(jnp.float32), B_pad, ROW_SENTINEL),
        padrows(pseudo_label2.astype(jnp.float32), B_pad, ROW_SENTINEL)])
    u_rows = jnp.concatenate([padrows(u_q1, B_pad, 1.0),
                              jnp.ones((B_pad,), jnp.float32)])
    rowmeta = jnp.stack([lab_rows, u_rows], axis=1)               # (R_pad, 2) f32

    col_idx = jnp.arange(K_pad)
    mem_lab_f = jnp.where(col_idx < K,
                          jnp.pad(mem_label.astype(jnp.float32), (0, K_pad - K)),
                          COL_SENTINEL)
    cen_lab_f = jnp.where(col_idx < sour_numclass,
                          jnp.pad(center_label.astype(jnp.float32),
                                  (0, K_pad - sour_numclass)),
                          COL_SENTINEL)
    u_col_q1 = (0.5 * jnp.pad(uncer_mem.astype(jnp.float32), (0, K_pad - K))) if have_u \
        else jnp.zeros((K_pad,), jnp.float32)
    colmeta = jnp.zeros((16, K_pad), jnp.float32)
    colmeta = colmeta.at[0].set(mem_lab_f).at[1].set(u_col_q1)    # rows 0..7 -> q1 tiles
    colmeta = colmeta.at[8].set(cen_lab_f)                        # rows 8..15 -> q2 tiles

    # ---- scalar prefetch: per-row-tile K-step count and label-block row ------
    q1_steps = _cdiv(K, TK)                  # == k_steps (no skipping for q1)
    q2_steps = max(1, _cdiv(sour_numclass, TK))
    steps = jnp.array([q1_steps] * n_half + [q2_steps] * n_half, jnp.int32)
    labrow = jnp.array([0] * n_half + [1] * n_half, jnp.int32)

    # ---- VMEM budget (exact-ish padded block sizes, capped by device VMEM) ---
    est = 4 * (2 * (TR * D_pad + TK * D_pad + TR * 128 + 8 * TK + TR * OUT_LANES)
               + 4 * TR * 128)
    try:
        cap = int(pltpu.get_tpu_info().vmem_capacity_bytes)
    except Exception:
        cap = 64 * 1024 * 1024
    vmem_limit = int(min(cap // 2, max(4 * est, 32 * 1024 * 1024)))

    out = pl.pallas_call(
        _fused_circle_kernel,
        out_shape=jax.ShapeDtypeStruct((R_pad, OUT_LANES), jnp.float32),
        grid_spec=pltpu.PrefetchScalarGridSpec(
            num_scalar_prefetch=2,
            grid=(2 * n_half, k_steps),
            in_specs=[
                pl.BlockSpec((TR, D_pad), lambda r, k, *_: (r, 0)),           # q rows
                pl.BlockSpec((TK, D_pad),
                             lambda r, k, s, l: (jnp.minimum(k, s[r] - 1), 0)),  # memory
                pl.BlockSpec((TR, 2), lambda r, k, *_: (r, 0)),               # row meta
                pl.BlockSpec((8, TK),
                             lambda r, k, s, l: (l[r], jnp.minimum(k, s[r] - 1))),  # col meta
            ],
            out_specs=pl.BlockSpec((TR, OUT_LANES), lambda r, k, *_: (r, 0)),
            scratch_shapes=[pltpu.VMEM((TR, 1), jnp.float32)] * 4,
        ),
        compiler_params=pltpu.CompilerParams(
            dimension_semantics=("parallel", "arbitrary"),
            vmem_limit_bytes=vmem_limit),
    )(steps, labrow, q_all, memory_pad, rowmeta, colmeta)

    rows = out[:, 0]
    loss_q1 = jnp.mean(rows[:B]) / LOSS_DIV
    loss_q2 = jnp.mean(rows[B_pad:B_pad + B]) / LOSS_DIV
    return loss_q1, loss_q2


# ---------------------------------------------------------------------------
# Plain-JAX glue replicating the rest of onlinememory.forward
# ---------------------------------------------------------------------------
def normalize(x, axis=-1):
    return x / (jnp.linalg.norm(x, ord=2, axis=axis, keepdims=True) + 1e-12)


def make_state(memory, index_memory, uncer_mem, index2label, sour_numclass):
    """Build functional state; memory is kept persistently padded in f32."""
    K, D = memory.shape
    K_pad = _round_up(K, 128)
    D_pad = _round_up(D, 128)
    memory_pad = jnp.zeros((K_pad, D_pad), jnp.float32).at[:K, :D].set(
        memory.astype(jnp.float32))
    return dict(memory_pad=memory_pad,
                index_memory=index_memory.astype(jnp.int32),
                uncer=uncer_mem.astype(jnp.float32),
                head=jnp.int32(0),
                index2label=index2label.astype(jnp.int32),
                sour_numclass=int(sour_numclass),
                queueSize=int(K),
                inputSize=int(D))


def onlinememory_forward(state, q1, q2, index, sour_labels, uncer=None):
    """Functional version of onlinememory.forward.

    Returns ((loss_q1, loss_q2, None, None), new_state).
    """
    memory_pad = state["memory_pad"]
    index_memory = state["index_memory"]
    uncer_mem = state["uncer"]
    head = state["head"]
    i2l = state["index2label"]
    S = state["sour_numclass"]
    K = state["queueSize"]
    D = state["inputSize"]
    D_pad = memory_pad.shape[1]

    B = q1.shape[0]
    q1n = normalize(q1, axis=-1)
    q2n = normalize(q2, axis=-1)

    # 1-D label lookups; the (B,K) masks are built inside the kernel.
    idx_q1 = index + S
    pseudo_label1 = i2l[idx_q1].astype(jnp.int32)                            # (B,)
    mem_label = jnp.where(index_memory < 0, -1,
                          i2l[jnp.maximum(index_memory, 0)]).astype(jnp.int32)  # (K,)
    pseudo_label2 = i2l[sour_labels].astype(jnp.int32)                       # (B,)
    center_label = i2l[jnp.arange(S)].astype(jnp.int32)                      # (S,)

    loss_q1, loss_q2 = fused_circle_losses(
        q1n, q2n, memory_pad, K, S, pseudo_label1, mem_label,
        pseudo_label2, center_label, uncer, uncer_mem)

    # ----- queue updates (no_grad block); padded columns stay zero -----
    q1n_pad = jnp.pad(q1n.astype(jnp.float32), ((0, 0), (0, D_pad - D)))
    q2n_pad = jnp.pad(q2n.astype(jnp.float32), ((0, 0), (0, D_pad - D)))

    out_ids = (jnp.arange(B) + head) % (K - S) + S
    memory_pad = memory_pad.at[out_ids].set(q1n_pad)
    index_memory = index_memory.at[out_ids].set(idx_q1.astype(index_memory.dtype))
    if uncer is not None:
        uncer_mem = uncer_mem.at[out_ids].set(uncer.astype(uncer_mem.dtype))
    new_head = (head + B) % (K - S)

    # Sequential momentum update of source-class centers (duplicates compound
    # exactly like the PyTorch loop).
    def body(i, mem):
        y = sour_labels[i]
        row = MOMENTUM * mem[y] + (1.0 - MOMENTUM) * q2n_pad[i]
        row = row / jnp.linalg.norm(row)
        return mem.at[y].set(row)

    memory_pad = jax.lax.fori_loop(0, B, body, memory_pad)

    new_state = dict(state)
    new_state.update(memory_pad=memory_pad, index_memory=index_memory,
                     uncer=uncer_mem, head=new_head)
    return (loss_q1, loss_q2, None, None), new_state


# ---------------------------------------------------------------------------
# Pure-JAX reference (mirrors the PyTorch math) used only for self-checking.
# ---------------------------------------------------------------------------
def _reference_losses(q1n, q2n, memory, mem_label, pseudo_label1, pseudo_label2,
                      center_label, S, uncer, uncer_mem):
    def lse(value, weight, axis):
        m = jnp.max(value, axis=axis, keepdims=True)
        return (m + jnp.log(jnp.sum(weight * jnp.exp(value - m),
                                    axis=axis, keepdims=True)))[:, 0]

    def circle(q, mem, row_lab, col_lab, w):
        sim = jnp.matmul(q, mem.T, precision=jax.lax.Precision.HIGHEST)
        is_pos = (row_lab[:, None] == col_lab[None, :]).astype(jnp.float32)
        is_neg = 1.0 - is_pos
        s_p = sim * is_pos
        s_n = sim * is_neg
        alpha_p = jnp.maximum(-s_p + 1.0 + M_MARGIN, 0.0)
        alpha_n = jnp.maximum(s_n + M_MARGIN, 0.0)
        logit_p = -GAMMA * alpha_p * (s_p - (1.0 - M_MARGIN))
        logit_n = GAMMA * alpha_n * (s_n - M_MARGIN)
        lp = lse(logit_p - 99999.0 * is_neg, w, 1)
        ln = lse(logit_n - 99999.0 * is_pos, w, 1)
        return jnp.mean(jnp.logaddexp(lp + ln, 0.0)) / LOSS_DIV

    B = q1n.shape[0]
    K = memory.shape[0]
    if uncer is not None:
        w1 = (uncer[:, None] + uncer_mem[None, :]) / 2.0
    else:
        w1 = jnp.ones((B, K), jnp.float32)
    loss1 = circle(q1n, memory, pseudo_label1, mem_label, w1)
    loss2 = circle(q2n, memory[:S], pseudo_label2, center_label,
                   jnp.ones((B, S), jnp.float32))
    return loss1, loss2


# ---------------------------------------------------------------------------
if __name__ == "__main__":
    key = jax.random.PRNGKey(0)

    # Small synthetic configuration
    B = 8                # batch size
    D = 32               # inputSize (feature dim)
    K = 128              # queueSize
    SOUR_NUMCLASS = 16
    NUM_TOTAL = 256      # size of index2label table

    k1, k2, k3, k4, k5, k6 = jax.random.split(key, 6)

    # deterministic buffer init (mirrors __init__)
    stdv = 1.0 / math.sqrt(D / 3)
    memory = jax.random.uniform(k1, (K, D), jnp.float32) * (2 * stdv) - stdv
    # seed part of the queue with valid indices so positives exist
    index_memory = jnp.where(
        jnp.arange(K) % 3 == 0, -1, jnp.arange(K) % NUM_TOTAL).astype(jnp.int32)
    uncer_mem = jnp.ones((K,), jnp.float32)
    index2label = (jnp.arange(NUM_TOTAL) % SOUR_NUMCLASS).astype(jnp.int32)

    state = make_state(memory, index_memory, uncer_mem, index2label, SOUR_NUMCLASS)

    # example inputs (tar_tri / tar_tri_ema are unused by the reference forward)
    q1 = jax.random.normal(k2, (B, D), jnp.float32)
    q2 = jax.random.normal(k3, (B, D), jnp.float32)
    index = jax.random.randint(k4, (B,), 0, NUM_TOTAL - SOUR_NUMCLASS, jnp.int32)
    sour_labels = jax.random.randint(k5, (B,), 0, SOUR_NUMCLASS, jnp.int32)
    uncer = jax.random.uniform(k6, (B,), jnp.float32)

    (loss_q1, loss_q2, _, _), new_state = onlinememory_forward(
        state, q1, q2, index, sour_labels, uncer=uncer)
    loss_q1 = jax.block_until_ready(loss_q1)
    loss_q2 = jax.block_until_ready(loss_q2)
    jax.block_until_ready(new_state["memory_pad"])

    # ---- self-check against a pure-JAX reference of the PyTorch math --------
    q1n = normalize(q1)
    q2n = normalize(q2)
    pl1 = index2label[index + SOUR_NUMCLASS]
    mem_lab = jnp.where(index_memory < 0, -1,
                        index2label[jnp.maximum(index_memory, 0)])
    pl2 = index2label[sour_labels]
    cen_lab = index2label[jnp.arange(SOUR_NUMCLASS)]
    ref1, ref2 = _reference_losses(q1n, q2n, memory, mem_lab, pl1, pl2,
                                   cen_lab, SOUR_NUMCLASS, uncer, uncer_mem)

    assert jnp.isfinite(loss_q1) and jnp.isfinite(loss_q2)
    assert jnp.allclose(loss_q1, ref1, rtol=5e-2, atol=5e-2)
    assert jnp.allclose(loss_q2, ref2, rtol=5e-2, atol=5e-2)
    print("KERNEL_OK")
</pallas_src>

<mosaic_0001>
module attributes {stable_mosaic.version = 11 : i64} {
  func.func @_fused_circle_kernel(%arg0: i32, %arg1: i32, %arg2: memref<2xi32, #tpu.memory_space<smem>>, %arg3: memref<2xi32, #tpu.memory_space<smem>>, %arg4: memref<8x128xf32, #tpu.memory_space<vmem>>, %arg5: memref<128x128xf32, #tpu.memory_space<vmem>>, %arg6: memref<8x2xf32, #tpu.memory_space<vmem>>, %arg7: memref<8x128xf32, #tpu.memory_space<vmem>>, %arg8: memref<8x128xf32, #tpu.memory_space<vmem>>, %arg9: memref<8x1xf32, #tpu.memory_space<vmem>>, %arg10: memref<8x1xf32, #tpu.memory_space<vmem>>, %arg11: memref<8x1xf32, #tpu.memory_space<vmem>>, %arg12: memref<8x1xf32, #tpu.memory_space<vmem>>) attributes {dimension_semantics = [#tpu.dimension_semantics<parallel>, #tpu.dimension_semantics<arbitrary>], iteration_bounds = array<i64: 2, 1>, scalar_prefetch = 2 : i64, scratch_operands = 4 : i64, tpu.core_type = #tpu.core_type<tc>, window_params = [{transform_indices = @transform_0, window_bounds = array<i64: 8, 128>}, {transform_indices = @transform_1, window_bounds = array<i64: 128, 128>}, {transform_indices = @transform_2, window_bounds = array<i64: 8, 2>}, {transform_indices = @transform_3, window_bounds = array<i64: 8, 128>}, {transform_indices = @transform_4, window_bounds = array<i64: 8, 128>}]} {
    %0 = arith.index_cast %arg0 : i32 to index
    %1 = memref.load %arg2[%0] : memref<2xi32, #tpu.memory_space<smem>>
    %2 = arith.cmpi slt, %arg1, %1 : i32
    %3 = arith.extui %2 : i1 to i32
    %c0_i32 = arith.constant 0 : i32
    %4 = arith.cmpi ne, %3, %c0_i32 : i32
    scf.if %4 {
      %c0_i32_0 = arith.constant 0 : i32
      %5 = arith.cmpi eq, %arg1, %c0_i32_0 : i32
      %6 = arith.extui %5 : i1 to i32
      %c0_i32_1 = arith.constant 0 : i32
      %7 = arith.cmpi ne, %6, %c0_i32_1 : i32
      scf.if %7 {
        %cst_51 = arith.constant -3.000000e+38 : f32
        %94 = vector.broadcast %cst_51 : f32 to vector<8x1xf32>
        %c0_52 = arith.constant 0 : index
        %c0_53 = arith.constant 0 : index
        %95 = vector.load %arg9[%c0_52, %c0_53] : memref<8x1xf32, #tpu.memory_space<vmem>>, vector<8x1xf32>
        tpu.vector_store %arg9[%c0_52, %c0_53], %94 {strides = array<i32>} : memref<8x1xf32, #tpu.memory_space<vmem>>, vector<8x1xf32>,
        %cst_54 = arith.constant -3.000000e+38 : f32
        %96 = vector.broadcast %cst_54 : f32 to vector<8x1xf32>
        %c0_55 = arith.constant 0 : index
        %c0_56 = arith.constant 0 : index
        %97 = vector.load %arg11[%c0_55, %c0_56] : memref<8x1xf32, #tpu.memory_space<vmem>>, vector<8x1xf32>
        tpu.vector_store %arg11[%c0_55, %c0_56], %96 {strides = array<i32>} : memref<8x1xf32, #tpu.memory_space<vmem>>, vector<8x1xf32>,
        %cst_57 = arith.constant 0.000000e+00 : f32
        %98 = vector.broadcast %cst_57 : f32 to vector<8x1xf32>
        %c0_58 = arith.constant 0 : index
        %c0_59 = arith.constant 0 : index
        %99 = vector.load %arg10[%c0_58, %c0_59] : memref<8x1xf32, #tpu.memory_space<vmem>>, vector<8x1xf32>
        tpu.vector_store %arg10[%c0_58, %c0_59], %98 {strides = array<i32>} : memref<8x1xf32, #tpu.memory_space<vmem>>, vector<8x1xf32>,
        %cst_60 = arith.constant 0.000000e+00 : f32
        %100 = vector.broadcast %cst_60 : f32 to vector<8x1xf32>
        %c0_61 = arith.constant 0 : index
        %c0_62 = arith.constant 0 : index
        %101 = vector.load %arg12[%c0_61, %c0_62] : memref<8x1xf32, #tpu.memory_space<vmem>>, vector<8x1xf32>
        tpu.vector_store %arg12[%c0_61, %c0_62], %100 {strides = array<i32>} : memref<8x1xf32, #tpu.memory_space<vmem>>, vector<8x1xf32>,
      } else {
      }
      %c0 = arith.constant 0 : index
      %c0_2 = arith.constant 0 : index
      %8 = vector.load %arg4[%c0, %c0_2] : memref<8x128xf32, #tpu.memory_space<vmem>>, vector<8x128xf32>
      %c0_3 = arith.constant 0 : index
      %c0_4 = arith.constant 0 : index
      %9 = vector.load %arg5[%c0_3, %c0_4] : memref<128x128xf32, #tpu.memory_space<vmem>>, vector<128x128xf32>
      %cst = arith.constant dense<0.000000e+00> : vector<8x128xf32>
      %10 = tpu.matmul %8, %9, %cst {dimension_numbers = #tpu.dot_dimension_numbers<[1], [1], [0], [0], [0, 0, 1, 0], [], []>} : vector<8x128xf32>, vector<128x128xf32>, vector<8x128xf32> -> vector<8x128xf32>
      %c0_5 = arith.constant 0 : index
      %c0_6 = arith.constant 0 : index
      %11 = vector.load %arg6[%c0_5, %c0_6] : memref<8x2xf32, #tpu.memory_space<vmem>>, vector<8x1xf32>
      %c0_7 = arith.constant 0 : index
      %c1 = arith.constant 1 : index
      %12 = vector.load %arg6[%c0_7, %c1] : memref<8x2xf32, #tpu.memory_space<vmem>>, vector<8x1xf32>
      %c0_8 = arith.constant 0 : index
      %c0_9 = arith.constant 0 : index
      %13 = vector.load %arg7[%c0_8, %c0_9] : memref<8x128xf32, #tpu.memory_space<vmem>>, vector<1x128xf32>
      %c1_10 = arith.constant 1 : index
      %c0_11 = arith.constant 0 : index
      %14 = vector.load %arg7[%c1_10, %c0_11] : memref<8x128xf32, #tpu.memory_space<vmem>>, vector<1x128xf32>
      %cst_12 = arith.constant -2.000000e+00 : f32
      %15 = vector.broadcast %cst_12 : f32 to vector<1x128xf32>
      %16 = arith.cmpf one, %13, %15 : vector<1x128xf32>
      %17 = vector.broadcast %11 : vector<8x1xf32> to vector<8x128xf32>
      %18 = vector.broadcast %13 : vector<1x128xf32> to vector<8x128xf32>
      %19 = arith.cmpf oeq, %17, %18 : vector<8x128xf32>
      %cst_13 = arith.constant 1.250000e+00 : f32
      %20 = vector.broadcast %cst_13 : f32 to vector<8x128xf32>
      %21 = arith.subf %20, %10 : vector<8x128xf32>
      %cst_14 = arith.constant 0.000000e+00 : f32
      %22 = vector.broadcast %cst_14 : f32 to vector<8x128xf32>
      %23 = arith.maximumf %21, %22 : vector<8x128xf32>
      %cst_15 = arith.constant -1.280000e+02 : f32
      %24 = vector.broadcast %cst_15 : f32 to vector<8x128xf32>
      %25 = arith.mulf %24, %23 : vector<8x128xf32>
      %cst_16 = arith.constant 7.500000e-01 : f32
      %26 = vector.broadcast %cst_16 : f32 to vector<8x128xf32>
      %27 = arith.subf %10, %26 : vector<8x128xf32>
      %28 = arith.mulf %25, %27 : vector<8x128xf32>
      %cst_17 = arith.constant 2.500000e-01 : f32
      %29 = vector.broadcast %cst_17 : f32 to vector<8x128xf32>
      %30 = arith.addf %10, %29 : vector<8x128xf32>
      %cst_18 = arith.constant 0.000000e+00 : f32
      %31 = vector.broadcast %cst_18 : f32 to vector<8x128xf32>
      %32 = arith.maximumf %30, %31 : vector<8x128xf32>
      %cst_19 = arith.constant 1.280000e+02 : f32
      %33 = vector.broadcast %cst_19 : f32 to vector<8x128xf32>
      %34 = arith.mulf %33, %32 : vector<8x128xf32>
      %cst_20 = arith.constant 2.500000e-01 : f32
      %35 = vector.broadcast %cst_20 : f32 to vector<8x128xf32>
      %36 = arith.subf %10, %35 : vector<8x128xf32>
      %37 = arith.mulf %34, %36 : vector<8x128xf32>
      %38 = arith.select %19, %28, %37 : vector<8x128xi1>, vector<8x128xf32>
      %cst_21 = arith.constant -9.999900e+04 : f32
      %39 = vector.shape_cast %16 : vector<1x128xi1> to vector<1x128xi1>
      %40 = vector.broadcast %39 : vector<1x128xi1> to vector<8x128xi1>
      %41 = vector.broadcast %cst_21 : f32 to vector<8x128xf32>
      %42 = arith.select %40, %38, %41 : vector<8x128xi1>, vector<8x128xf32>
      %43 = vector.broadcast %12 : vector<8x1xf32> to vector<8x128xf32>
      %44 = vector.broadcast %14 : vector<1x128xf32> to vector<8x128xf32>
      %45 = arith.addf %43, %44 : vector<8x128xf32>
      %cst_22 = arith.constant -9.999900e+04 : f32
      %46 = vector.broadcast %cst_22 : f32 to vector<8x128xf32>
      %47 = arith.select %19, %42, %46 : vector<8x128xi1>, vector<8x128xf32>
      %cst_23 = arith.constant dense<0xFF800000> : vector<8xf32>
      %48 = vector.multi_reduction <maximumf>, %47, %cst_23 [1] : vector<8x128xf32> to vector<8xf32>
      %49 = vector.shape_cast %48 : vector<8xf32> to vector<8x1xf32>
      %cst_24 = arith.constant -9.999900e+04 : f32
      %50 = vector.broadcast %cst_24 : f32 to vector<8x128xf32>
      %51 = arith.select %19, %50, %42 : vector<8x128xi1>, vector<8x128xf32>
      %cst_25 = arith.constant dense<0xFF800000> : vector<8xf32>
      %52 = vector.multi_reduction <maximumf>, %51, %cst_25 [1] : vector<8x128xf32> to vector<8xf32>
      %53 = vector.shape_cast %52 : vector<8xf32> to vector<8x1xf32>
      %c0_26 = arith.constant 0 : index
      %c0_27 = arith.constant 0 : index
      %54 = vector.load %arg9[%c0_26, %c0_27] : memref<8x1xf32, #tpu.memory_space<vmem>>, vector<8x1xf32>
      %55 = arith.maximumf %54, %49 : vector<8x1xf32>
      %c0_28 = arith.constant 0 : index
      %c0_29 = arith.constant 0 : index
      %56 = vector.load %arg11[%c0_28, %c0_29] : memref<8x1xf32, #tpu.memory_space<vmem>>, vector<8x1xf32>
      %57 = arith.maximumf %56, %53 : vector<8x1xf32>
      %58 = vector.shape_cast %55 : vector<8x1xf32> to vector<8x1xf32>
      %59 = vector.broadcast %58 : vector<8x1xf32> to vector<8x128xf32>
      %60 = vector.shape_cast %57 : vector<8x1xf32> to vector<8x1xf32>
      %61 = vector.broadcast %60 : vector<8x1xf32> to vector<8x128xf32>
      %62 = arith.select %19, %59, %61 : vector<8x128xi1>, vector<8x128xf32>
      %63 = arith.subf %42, %62 : vector<8x128xf32>
      %64 = math.exp %63 : vector<8x128xf32>
      %65 = arith.mulf %45, %64 : vector<8x128xf32>
      %cst_30 = arith.constant 0.000000e+00 : f32
      %66 = vector.broadcast %cst_30 : f32 to vector<8x128xf32>
      %67 = arith.select %19, %65, %66 : vector<8x128xi1>, vector<8x128xf32>
      %cst_31 = arith.constant dense<0.000000e+00> : vector<8xf32>
      %68 = vector.multi_reduction <add>, %67, %cst_31 [1] : vector<8x128xf32> to vector<8xf32>
      %69 = vector.shape_cast %68 : vector<8xf32> to vector<8x1xf32>
      %cst_32 = arith.constant 0.000000e+00 : f32
      %70 = vector.broadcast %cst_32 : f32 to vector<8x128xf32>
      %71 = arith.select %19, %70, %65 : vector<8x128xi1>, vector<8x128xf32>
      %cst_33 = arith.constant dense<0.000000e+00> : vector<8xf32>
      %72 = vector.multi_reduction <add>, %71, %cst_33 [1] : vector<8x128xf32> to vector<8xf32>
      %73 = vector.shape_cast %72 : vector<8xf32> to vector<8x1xf32>
      %c0_34 = arith.constant 0 : index
      %c0_35 = arith.constant 0 : index
      %74 = vector.load %arg10[%c0_34, %c0_35] : memref<8x1xf32, #tpu.memory_space<vmem>>, vector<8x1xf32>
      %c0_36 = arith.constant 0 : index
      %c0_37 = arith.constant 0 : index
      %75 = vector.load %arg9[%c0_36, %c0_37] : memref<8x1xf32, #tpu.memory_space<vmem>>, vector<8x1xf32>
      %76 = arith.subf %75, %55 : vector<8x1xf32>
      %77 = math.exp %76 : vector<8x1xf32>
      %78 = arith.mulf %74, %77 : vector<8x1xf32>
      %79 = arith.addf %78, %69 : vector<8x1xf32>
      %c0_38 = arith.constant 0 : index
      %c0_39 = arith.constant 0 : index
      %80 = vector.load %arg10[%c0_38, %c0_39] : memref<8x1xf32, #tpu.memory_space<vmem>>, vector<8x1xf32>
      tpu.vector_store %arg10[%c0_38, %c0_39], %79 {strides = array<i32>} : memref<8x1xf32, #tpu.memory_space<vmem>>, vector<8x1xf32>,
      %c0_40 = arith.constant 0 : index
      %c0_41 = arith.constant 0 : index
      %81 = vector.load %arg12[%c0_40, %c0_41] : memref<8x1xf32, #tpu.memory_space<vmem>>, vector<8x1xf32>
      %c0_42 = arith.constant 0 : index
      %c0_43 = arith.constant 0 : index
      %82 = vector.load %arg11[%c0_42, %c0_43] : memref<8x1xf32, #tpu.memory_space<vmem>>, vector<8x1xf32>
      %83 = arith.subf %82, %57 : vector<8x1xf32>
      %84 = math.exp %83 : vector<8x1xf32>
      %85 = arith.mulf %81, %84 : vector<8x1xf32>
      %86 = arith.addf %85, %73 : vector<8x1xf32>
      %c0_44 = arith.constant 0 : index
      %c0_45 = arith.constant 0 : index
      %87 = vector.load %arg12[%c0_44, %c0_45] : memref<8x1xf32, #tpu.memory_space<vmem>>, vector<8x1xf32>
      tpu.vector_store %arg12[%c0_44, %c0_45], %86 {strides = array<i32>} : memref<8x1xf32, #tpu.memory_space<vmem>>, vector<8x1xf32>,
      %c0_46 = arith.constant 0 : index
      %c0_47 = arith.constant 0 : index
      %88 = vector.load %arg9[%c0_46, %c0_47] : memref<8x1xf32, #tpu.memory_space<vmem>>, vector<8x1xf32>
      tpu.vector_store %arg9[%c0_46, %c0_47], %55 {strides = array<i32>} : memref<8x1xf32, #tpu.memory_space<vmem>>, vector<8x1xf32>,
      %c0_48 = arith.constant 0 : index
      %c0_49 = arith.constant 0 : index
      %89 = vector.load %arg11[%c0_48, %c0_49] : memref<8x1xf32, #tpu.memory_space<vmem>>, vector<8x1xf32>
      tpu.vector_store %arg11[%c0_48, %c0_49], %57 {strides = array<i32>} : memref<8x1xf32, #tpu.memory_space<vmem>>, vector<8x1xf32>,
      %c1_i32 = arith.constant 1 : i32
      %90 = arith.subi %1, %c1_i32 : i32
      %91 = arith.cmpi eq, %arg1, %90 : i32
      %92 = arith.extui %91 : i1 to i32
      %c0_i32_50 = arith.constant 0 : i32
      %93 = arith.cmpi ne, %92, %c0_i32_50 : i32
      scf.if %93 {
        %c0_51 = arith.constant 0 : index
        %c0_52 = arith.constant 0 : index
        %94 = vector.load %arg9[%c0_51, %c0_52] : memref<8x1xf32, #tpu.memory_space<vmem>>, vector<8x1xf32>
        %c0_53 = arith.constant 0 : index
        %c0_54 = arith.constant 0 : index
        %95 = vector.load %arg10[%c0_53, %c0_54] : memref<8x1xf32, #tpu.memory_space<vmem>>, vector<8x1xf32>
        %cst_55 = arith.constant 1.000000e-30 : f32
        %96 = vector.broadcast %cst_55 : f32 to vector<8x1xf32>
        %97 = arith.addf %95, %96 : vector<8x1xf32>
        %98 = math.log %97 : vector<8x1xf32>
        %99 = arith.addf %94, %98 : vector<8x1xf32>
        %c0_56 = arith.constant 0 : index
        %c0_57 = arith.constant 0 : index
        %100 = vector.load %arg11[%c0_56, %c0_57] : memref<8x1xf32, #tpu.memory_space<vmem>>, vector<8x1xf32>
        %c0_58 = arith.constant 0 : index
        %c0_59 = arith.constant 0 : index
        %101 = vector.load %arg12[%c0_58, %c0_59] : memref<8x1xf32, #tpu.memory_space<vmem>>, vector<8x1xf32>
        %cst_60 = arith.constant 1.000000e-30 : f32
        %102 = vector.broadcast %cst_60 : f32 to vector<8x1xf32>
        %103 = arith.addf %101, %102 : vector<8x1xf32>
        %104 = math.log %103 : vector<8x1xf32>
        %105 = arith.addf %100, %104 : vector<8x1xf32>
        %106 = arith.addf %99, %105 : vector<8x1xf32>
        %cst_61 = arith.constant 0.000000e+00 : f32
        %107 = vector.broadcast %cst_61 : f32 to vector<8x1xf32>
        %108 = arith.maximumf %106, %107 : vector<8x1xf32>
        %109 = vector.broadcast %cst_61 : f32 to vector<8x1xf32>
        %110 = arith.subf %106, %109 : vector<8x1xf32>
        %111 = arith.cmpf one, %110, %110 : vector<8x1xf32>
        %112 = vector.broadcast %cst_61 : f32 to vector<8x1xf32>
        %113 = arith.addf %106, %112 : vector<8x1xf32>
        %114 = math.absf %110 : vector<8x1xf32>
        %cst_62 = arith.constant 0.000000e+00 : f32
        %115 = vector.broadcast %cst_62 : f32 to vector<8x1xf32>
        %116 = arith.subf %115, %114 : vector<8x1xf32>
        %117 = math.exp %116 : vector<8x1xf32>
        %118 = math.log1p %117 : vector<8x1xf32>
        %119 = arith.addf %108, %118 : vector<8x1xf32>
        %120 = arith.select %111, %113, %119 : vector<8x1xi1>, vector<8x1xf32>
        %121 = vector.shape_cast %120 : vector<8x1xf32> to vector<8x1xf32>
        %122 = vector.broadcast %121 : vector<8x1xf32> to vector<8x128xf32>
        %c0_63 = arith.constant 0 : index
        %c0_64 = arith.constant 0 : index
        %123 = vector.load %arg8[%c0_63, %c0_64] : memref<8x128xf32, #tpu.memory_space<vmem>>, vector<8x128xf32>
        tpu.vector_store %arg8[%c0_63, %c0_64], %122 {strides = array<i32>} : memref<8x128xf32, #tpu.memory_space<vmem>>, vector<8x128xf32>,
      } else {
      }
    } else {
    }
    return
  }
  func.func @transform_0(%arg0: i32, %arg1: i32, %arg2: memref<2xi32, #tpu.memory_space<smem>>, %arg3: memref<2xi32, #tpu.memory_space<smem>>) -> (i32, i32) {
    %c0_i32 = arith.constant 0 : i32
    %c0_i32_0 = arith.constant 0 : i32
    return %arg0, %c0_i32 : i32, i32
  }
  func.func @transform_1(%arg0: i32, %arg1: i32, %arg2: memref<2xi32, #tpu.memory_space<smem>>, %arg3: memref<2xi32, #tpu.memory_space<smem>>) -> (i32, i32) {
    %0 = arith.index_cast %arg0 : i32 to index
    %1 = memref.load %arg2[%0] : memref<2xi32, #tpu.memory_space<smem>>
    %c1_i32 = arith.constant 1 : i32
    %2 = arith.subi %1, %c1_i32 : i32
    %3 = arith.minsi %arg1, %2 : i32
    %c0_i32 = arith.constant 0 : i32
    %c0_i32_0 = arith.constant 0 : i32
    return %3, %c0_i32 : i32, i32
  }
  func.func @transform_2(%arg0: i32, %arg1: i32, %arg2: memref<2xi32, #tpu.memory_space<smem>>, %arg3: memref<2xi32, #tpu.memory_space<smem>>) -> (i32, i32) {
    %c0_i32 = arith.constant 0 : i32
    %c0_i32_0 = arith.constant 0 : i32
    return %arg0, %c0_i32 : i32, i32
  }
  func.func @transform_3(%arg0: i32, %arg1: i32, %arg2: memref<2xi32, #tpu.memory_space<smem>>, %arg3: memref<2xi32, #tpu.memory_space<smem>>) -> (i32, i32) {
    %0 = arith.index_cast %arg0 : i32 to index
    %1 = memref.load %arg3[%0] : memref<2xi32, #tpu.memory_space<smem>>
    %2 = arith.index_cast %arg0 : i32 to index
    %3 = memref.load %arg2[%2] : memref<2xi32, #tpu.memory_space<smem>>
    %c1_i32 = arith.constant 1 : i32
    %4 = arith.subi %3, %c1_i32 : i32
    %5 = arith.minsi %arg1, %4 : i32
    %c0_i32 = arith.constant 0 : i32
    return %1, %5 : i32, i32
  }
  func.func @transform_4(%arg0: i32, %arg1: i32, %arg2: memref<2xi32, #tpu.memory_space<smem>>, %arg3: memref<2xi32, #tpu.memory_space<smem>>) -> (i32, i32) {
    %c0_i32 = arith.constant 0 : i32
    %c0_i32_0 = arith.constant 0 : i32
    return %arg0, %c0_i32 : i32, i32
  }
}

</mosaic_0001>

<llo_original>
// kernel: tpu_custom_call.1
$region0: #{tpu_custom_call.1}
  #allocation0 [shape = 'u32[]', space=smem, size = 0x4, offset = 0x4, fixed_abs, tag = 'smem constant byte address 0x4 - core index']
  #allocation1 [shape = 'u32[144,128]{1,0:T(1,128)}', space=vmem, size = 0x12000, scoped, tag = 'internal scratch']
  #allocation2 [shape = 'f32[8,1]{1,0:T(8,128)}', space=vmem, size = 0x1000, scoped, tag = 'scratch operand']
  #allocation3 [shape = 'f32[8,1]{1,0:T(8,128)}', space=vmem, size = 0x1000, scoped, tag = 'scratch operand']
  #allocation4 [shape = 'f32[8,1]{1,0:T(8,128)}', space=vmem, size = 0x1000, scoped, tag = 'scratch operand']
  #allocation5 [shape = 'f32[8,1]{1,0:T(8,128)}', space=vmem, size = 0x1000, scoped, tag = 'scratch operand']
  #allocation6 [shape = 's32[1]{0}', space=sflag, size = 0x4, scoped, tag = 'scoped memory for tpu_custom_call.1']
  #allocation7 [shape = 'u8[512]{0}', space=smem, size = 0x200, scoped, tag = 'prefetched SMEM operand 0']
  #allocation8 [shape = 'u8[512]{0}', space=smem, size = 0x200, scoped, tag = 'prefetched SMEM operand 1']
  %s0 = inlined_call_operand.vmem [shape: s32[2], index: 0, kind: input, shape index: {}]
  %s1 = inlined_call_operand.hbm [shape: s32[2], index: 1, kind: input, shape index: {}]
  %s2 = inlined_call_operand.vmem [shape: f32[16,128], index: 2, kind: input, shape index: {}]
  %s3 = inlined_call_operand.hbm [shape: f32[128,128], index: 3, kind: input, shape index: {}]
  %s4 = inlined_call_operand.vmem [shape: f32[16,2], index: 4, kind: input, shape index: {}]
  %s5 = inlined_call_operand.vmem [shape: f32[16,128], index: 5, kind: input, shape index: {}]
  %s6 = inlined_call_operand.hbm [shape: f32[16,128], index: 6, kind: output, shape index: {}]
  %s7 = sld [smem:[#allocation0]]
  $region65: #{tpu_custom_call.1} parent=0
    _
  %s9 = ssub.s32 1, %s7
  %s10 = scalar_select 0, %s9, %s7
  %s11 = sshll.u32 %s0, 4
  %s12 = int_to_ptr.vmem [resolvable:$true] %s11
  %14 = dma.vmem_to_smem %s12, 16, [#allocation7], [#allocation6]
  %16 = dma.hbm_to_smem %s1, 16, [#allocation8], [#allocation6]
  %17 = dma.done [#allocation6], 32
  %18 = sfence
  $region1: #{tpu_custom_call.1} parent=0
    #allocation9 [shape = 'u8[131072]{0}', space=vmem, size = 0x20000, scoped, tag = 'input window, operand 3']
    #allocation10 [shape = 's32[2]{0}', space=sflag, size = 0x8, scoped, tag = 'scoped memory for tpu_custom_call.1']
    #allocation11 [shape = 's32[2]{0}', space=sflag, size = 0x8, scoped, tag = 'scoped memory for tpu_custom_call.1']
    #allocation12 [shape = 'u8[8192]{0}', space=vmem, size = 0x2000, scoped, tag = 'output window, operand 0']
    %19 = vsyncpa [#allocation10], 0
    %s20 = scalar_lea.sflag [#allocation10], 1
    %21 = vsyncpa %s20, 0
    %22 = vsyncpa [#allocation11], 0
    %s23 = scalar_lea.sflag [#allocation11], 1
    %24 = vsyncpa %s23, 0
    loop: start=0, step=1, limit=4
    $region2: #{tpu_custom_call.1} parent=1 // loop_pre_header
      _
    $region3: #{tpu_custom_call.1} parent=1 // loop_header
      %s26 = sphi 0, %s30
      %p27 = scmp.ge.s32.totalorder %s26, 4
      %s33 = sphi 0, %s45
      %s34 = sphi 0, %s41
      %s35 = sphi 0, %s33
      %s36 = sphi 0, %s34
      %s37 = sphi 0, %s35
      %s38 = sphi 0, %s36
      %s48 = sphi 0, %s50
      %s51 = sphi 0, %s48
      %s52 = sphi 0, %s51
      %s68 = sphi 0, %s52
      %s82 = sphi 0, %s84
      %s85 = sphi 0, %s82
      %s86 = sphi 0, %s85
      %s102 = sphi 0, %s86
      %s108 = sphi 0, %s110
      %s111 = sphi 0, %s108
      %s112 = sphi 0, %s111
      %s128 = sphi 0, %s112
      %s146 = sphi 0, %s148
      %s149 = sphi 0, %s146
      %s150 = sphi 0, %s149
      %s166 = sphi 0, %s150
      %s172 = sphi 0, %s174
      %s175 = sphi 0, %s172
      %s176 = sphi 0, %s175
      %s192 = sphi 0, %s176
    $region4: #{tpu_custom_call.1} parent=1 // loop_header_branch
      %29 = sbr.rel (%p27) target = $region8
    $region5: #{tpu_custom_call.1} parent=1 // loop_body
      %s31 = ssub.s32 %s26, 1
      %s32 = ssub.s32 %s26, 2
      %s39 = sadd.s32 1, %s34
      %p40 = scmp.ge.s32.totalorder %s39, 1
      %s41 = scalar_select %p40, 0, %s39
      %s42 = sadd.s32 1, %s33
      %s43 = scalar_select %p40, %s42, %s33
      %p44 = scmp.ge.s32.totalorder %s43, 2
      %s45 = scalar_select %p44, 0, %s43
      %s46 = ssub.s32 %s33, %s45
      %p47 = scmp.eq.s32.totalorder %s46, 0
      %s49 = sadd.s32 %s48, 1
      %s50 = scalar_select %p47, %s48, %s49
      %p53 = pneg %p47
      %p54 = scmp.eq.s32.totalorder %s26, 1
      %p55 = por %p53, %p54
      %p56 = scmp.ne.s32.totalorder %s48, %s51
      %p57 = scmp.eq.s32.totalorder %s26, 0
      %p58 = por %p56, %p57
      %p59 = scmp.ne.s32.totalorder %s48, %s51
      %p60 = scmp.eq.s32.totalorder %s31, 1
      %p61 = por %p59, %p60
      %p62 = scmp.ne.s32.totalorder %s51, %s52
      %p63 = scmp.eq.s32.totalorder %s31, 0
      %p64 = por %p62, %p63
      %p65 = scmp.ne.s32.totalorder %s51, %s52
      %p66 = scmp.eq.s32.totalorder %s32, 1
      %p67 = por %p65, %p66
      %p69 = scmp.ne.s32.totalorder %s52, %s68
      %p70 = scmp.eq.s32.totalorder %s32, 0
      %p71 = por %p69, %p70
      %s72 = sld [smem:[#allocation7 + %s33]]
      %s73 = ssub.s32 %s72, 1
      %p74 = scmp.lt.s32.totalorder %s34, %s73
      %s75 = scalar_select %p74, %s34, %s73
      %s76 = sld [smem:[#allocation7 + %s45]]
      %s77 = ssub.s32 %s76, 1
      %p78 = scmp.lt.s32.totalorder %s41, %s77
      %s79 = scalar_select %p78, %s41, %s77
      %s80 = ssub.s32 %s75, %s79
      %p81 = scmp.eq.s32.totalorder %s80, 0
      %s83 = sadd.s32 %s82, 1
      %s84 = scalar_select %p81, %s82, %s83
      %p87 = pneg %p81
      %p88 = scmp.eq.s32.totalorder %s26, 1
      %p89 = por %p87, %p88
      %p90 = scmp.ne.s32.totalorder %s82, %s85
      %p91 = scmp.eq.s32.totalorder %s26, 0
      %p92 = por %p90, %p91
      %p93 = scmp.ne.s32.totalorder %s82, %s85
      %p94 = scmp.eq.s32.totalorder %s31, 1
      %p95 = por %p93, %p94
      %p96 = scmp.ne.s32.totalorder %s85, %s86
      %p97 = scmp.eq.s32.totalorder %s31, 0
      %p98 = por %p96, %p97
      %p99 = scmp.ne.s32.totalorder %s85, %s86
      %p100 = scmp.eq.s32.totalorder %s32, 1
      %p101 = por %p99, %p100
      %p103 = scmp.ne.s32.totalorder %s86, %s102
      %p104 = scmp.eq.s32.totalorder %s32, 0
      %p105 = por %p103, %p104
      %s106 = ssub.s32 %s33, %s45
      %p107 = scmp.eq.s32.totalorder %s106, 0
      %s109 = sadd.s32 %s108, 1
      %s110 = scalar_select %p107, %s108, %s109
      %p113 = pneg %p107
      %p114 = scmp.eq.s32.totalorder %s26, 1
      %p115 = por %p113, %p114
      %p116 = scmp.ne.s32.totalorder %s108, %s111
      %p117 = scmp.eq.s32.totalorder %s26, 0
      %p118 = por %p116, %p117
      %p119 = scmp.ne.s32.totalorder %s108, %s111
      %p120 = scmp.eq.s32.totalorder %s31, 1
      %p121 = por %p119, %p120
      %p122 = scmp.ne.s32.totalorder %s111, %s112
      %p123 = scmp.eq.s32.totalorder %s31, 0
      %p124 = por %p122, %p123
      %p125 = scmp.ne.s32.totalorder %s111, %s112
      %p126 = scmp.eq.s32.totalorder %s32, 1
      %p127 = por %p125, %p126
      %p129 = scmp.ne.s32.totalorder %s112, %s128
      %p130 = scmp.eq.s32.totalorder %s32, 0
      %p131 = por %p129, %p130
      %s132 = sld [smem:[#allocation8 + %s33]]
      %s133 = sld [smem:[#allocation7 + %s33]]
      %s134 = ssub.s32 %s133, 1
      %p135 = scmp.lt.s32.totalorder %s34, %s134
      %s136 = scalar_select %p135, %s34, %s134
      %s137 = sld [smem:[#allocation8 + %s45]]
      %s138 = sld [smem:[#allocation7 + %s45]]
      %s139 = ssub.s32 %s138, 1
      %p140 = scmp.lt.s32.totalorder %s41, %s139
      %s141 = scalar_select %p140, %s41, %s139
      %s142 = ssub.s32 %s132, %s137
      %s143 = ssub.s32 %s136, %s141
      %s144 = sor.u32 %s142, %s143
      %p145 = scmp.eq.s32.totalorder %s144, 0
      %s147 = sadd.s32 %s146, 1
      %s148 = scalar_select %p145, %s146, %s147
      %p151 = pneg %p145
      %p152 = scmp.eq.s32.totalorder %s26, 1
      %p153 = por %p151, %p152
      %p154 = scmp.ne.s32.totalorder %s146, %s149
      %p155 = scmp.eq.s32.totalorder %s26, 0
      %p156 = por %p154, %p155
      %p157 = scmp.ne.s32.totalorder %s146, %s149
      %p158 = scmp.eq.s32.totalorder %s31, 1
      %p159 = por %p157, %p158
      %p160 = scmp.ne.s32.totalorder %s149, %s150
      %p161 = scmp.eq.s32.totalorder %s31, 0
      %p162 = por %p160, %p161
      %p163 = scmp.ne.s32.totalorder %s149, %s150
      %p164 = scmp.eq.s32.totalorder %s32, 1
      %p165 = por %p163, %p164
      %p167 = scmp.ne.s32.totalorder %s150, %s166
      %p168 = scmp.eq.s32.totalorder %s32, 0
      %p169 = por %p167, %p168
      %s170 = ssub.s32 %s33, %s45
      %p171 = scmp.eq.s32.totalorder %s170, 0
      %s173 = sadd.s32 %s172, 1
      %s174 = scalar_select %p171, %s172, %s173
      %p177 = pneg %p171
      %p178 = scmp.eq.s32.totalorder %s26, 1
      %p179 = por %p177, %p178
      %p180 = scmp.ne.s32.totalorder %s172, %s175
      %p181 = scmp.eq.s32.totalorder %s26, 0
      %p182 = por %p180, %p181
      %p183 = scmp.ne.s32.totalorder %s172, %s175
      %p184 = scmp.eq.s32.totalorder %s31, 1
      %p185 = por %p183, %p184
      %p186 = scmp.ne.s32.totalorder %s175, %s176
      %p187 = scmp.eq.s32.totalorder %s31, 0
      %p188 = por %p186, %p187
      %p189 = scmp.ne.s32.totalorder %s175, %s176
      %p190 = scmp.eq.s32.totalorder %s32, 1
      %p191 = por %p189, %p190
      %p193 = scmp.ne.s32.totalorder %s176, %s192
      %p194 = scmp.eq.s32.totalorder %s32, 0
      %p195 = por %p193, %p194
      %p196 = scmp.le.s32.totalorder 1, %s26
      %p197 = scmp.lt.s32.totalorder %s26, 3
      %p198 = pnand %p196, %p197
      %p199 = pneg %p198
      // Predicated region
      $region9: #{tpu_custom_call.1} parent=5 // pred_check
        _
      $region10: #{tpu_custom_call.1} parent=5 // pred_check_branch
        %201 = sbr.rel (%p198) target = $region12
      $region11: #{tpu_custom_call.1} parent=5 // pred_region
        %s202 = ssub.s32 %s26, 1
      $region12: #{tpu_custom_call.1} parent=5 // pred_fallthru
        _
      %p203 = scmp.lt.s32.totalorder %s26, 2
      // Predicated region
      $region13: #{tpu_custom_call.1} parent=5 // pred_check
        %p204 = pneg %p203
      $region14: #{tpu_custom_call.1} parent=5 // pred_check_branch
        %206 = sbr.rel (%p204) target = $region16
      $region15: #{tpu_custom_call.1} parent=5 // pred_region
        // Predicated region
        $region17: #{tpu_custom_call.1} parent=15 // pred_check
          %p207 = pneg %p58
        $region18: #{tpu_custom_call.1} parent=15 // pred_check_branch
          %209 = sbr.rel (%p207) target = $region20
        $region19: #{tpu_custom_call.1} parent=15 // pred_region
          %p210 = scmp.lt.s32.totalorder %s33, 1
          %s211 = scalar_select %p210, %s33, 1
          %s212 = smul.addr %s211, 8
          %s213 = scalar_lea.vmem %s2, %s212
        $region20: #{tpu_custom_call.1} parent=15 // pred_fallthru
          _
        // Predicated region
        $region21: #{tpu_custom_call.1} parent=15 // pred_check
          %p214 = pneg %p92
        $region22: #{tpu_custom_call.1} parent=15 // pred_check_branch
          %216 = sbr.rel (%p214) target = $region24
        $region23: #{tpu_custom_call.1} parent=15 // pred_region
          %s217 = sand.u32 %s82, 1
          %s218 = scalar_lea.sflag [#allocation10], %s217
          %s219 = sand.u32 %s82, 1
          %s220 = smul.addr %s219, 128
          %s221 = scalar_lea.vmem [#allocation9], %s220
          %s222 = sld [smem:[#allocation7 + %s33]]
          %s223 = ssub.s32 %s222, 1
          %p224 = scmp.lt.s32.totalorder %s34, %s223
          %s225 = scalar_select %p224, %s34, %s223
          %s226 = smul.u32 16, %s225
          %s228 = ssub.s32 2048, 2048
          %229 = vsyncadd %s218, %s228
          %s230 = smul.addr %s226, 128
          %s231 = scalar_lea.hbm %s3, %s230
          %s232 = sshll.u32 %s221, 4
          %s233 = int_to_ptr.vmem [resolvable:$true] %s232
          %238 = dma.hbm_to_vmem [thread:$0]  %s231, 2048, %s233, %s218, 128, 128, 8
        $region24: #{tpu_custom_call.1} parent=15 // pred_fallthru
          _
        // Predicated region
        $region25: #{tpu_custom_call.1} parent=15 // pred_check
          %p239 = pneg %p118
        $region26: #{tpu_custom_call.1} parent=15 // pred_check_branch
          %241 = sbr.rel (%p239) target = $region28
        $region27: #{tpu_custom_call.1} parent=15 // pred_region
          %p242 = scmp.lt.s32.totalorder %s33, 1
          %s243 = scalar_select %p242, %s33, 1
          %s244 = smul.addr %s243, 8
          %s245 = scalar_lea.vmem %s4, %s244
        $region28: #{tpu_custom_call.1} parent=15 // pred_fallthru
          _
        // Predicated region
        $region29: #{tpu_custom_call.1} parent=15 // pred_check
          %p246 = pneg %p156
        $region30: #{tpu_custom_call.1} parent=15 // pred_check_branch
          %248 = sbr.rel (%p246) target = $region32
        $region31: #{tpu_custom_call.1} parent=15 // pred_region
          %s249 = sld [smem:[#allocation8 + %s33]]
          %s250 = sld [smem:[#allocation7 + %s33]]
          %s251 = ssub.s32 %s250, 1
          %p252 = scmp.lt.s32.totalorder %s34, %s251
          %s253 = scalar_select %p252, %s34, %s251
          %p254 = scmp.lt.s32.totalorder %s249, 1
          %s255 = scalar_select %p254, %s249, 1
          %p256 = scmp.lt.s32.totalorder %s253, 0
          %s257 = scalar_select %p256, %s253, 0
          %s258 = sadd.s32 %s257, %s255
          %s259 = smul.addr %s258, 8
          %s260 = scalar_lea.vmem %s5, %s259
          %s261 = sld [smem:[#allocation8 + %s33]]
          %s262 = sld [smem:[#allocation7 + %s33]]
          %s263 = ssub.s32 %s262, 1
          %p264 = scmp.lt.s32.totalorder %s34, %s263
          %s265 = scalar_select %p264, %s34, %s263
        $region32: #{tpu_custom_call.1} parent=15 // pred_fallthru
          _
      $region16: #{tpu_custom_call.1} parent=5 // pred_fallthru
        _
      %p266 = scmp.le.s32.totalorder 1, %s26
      %p267 = scmp.lt.s32.totalorder %s26, 3
      %p268 = pnand %p266, %p267
      %p269 = pneg %p268
      // Predicated region
      $region33: #{tpu_custom_call.1} parent=5 // pred_check
        _
      $region34: #{tpu_custom_call.1} parent=5 // pred_check_branch
        %271 = sbr.rel (%p268) target = $region36
      $region35: #{tpu_custom_call.1} parent=5 // pred_region
        %s272 = ssub.s32 %s26, 1
        %s273 = sand.u32 %s85, 1
        %s274 = scalar_lea.sflag [#allocation10], %s273
        %s275 = sand.u32 %s85, 1
        %s276 = smul.addr %s275, 128
        %s277 = scalar_lea.vmem [#allocation9], %s276
        // Predicated region
        $region37: #{tpu_custom_call.1} parent=35 // pred_check
          %p278 = pneg %p98
        $region38: #{tpu_custom_call.1} parent=35 // pred_check_branch
          %280 = sbr.rel (%p278) target = $region40
        $region39: #{tpu_custom_call.1} parent=35 // pred_region
          %281 = dma.done %s274, 2048
        $region40: #{tpu_custom_call.1} parent=35 // pred_fallthru
          _
        %p282 = scmp.lt.s32.totalorder %s35, 1
        %s283 = scalar_select %p282, %s35, 1
        %s284 = smul.addr %s283, 8
        %s285 = scalar_lea.vmem %s2, %s284
        %p286 = pneg %p64
        %p287 = pneg %p61
        %s288 = sand.u32 %s85, 1
        %s289 = scalar_lea.sflag [#allocation10], %s288
        %s290 = sand.u32 %s85, 1
        %s291 = smul.addr %s290, 128
        %s292 = scalar_lea.vmem [#allocation9], %s291
        %p293 = pneg %p98
        %p294 = pneg %p95
        %p295 = scmp.lt.s32.totalorder %s35, 1
        %s296 = scalar_select %p295, %s35, 1
        %s297 = smul.addr %s296, 8
        %s298 = scalar_lea.vmem %s4, %s297
        %p299 = pneg %p124
        %p300 = pneg %p121
        %s301 = sld [smem:[#allocation8 + %s35]]
        %s302 = sld [smem:[#allocation7 + %s35]]
        %s303 = ssub.s32 %s302, 1
        %p304 = scmp.lt.s32.totalorder %s36, %s303
        %s305 = scalar_select %p304, %s36, %s303
        %p306 = scmp.lt.s32.totalorder %s301, 1
        %s307 = scalar_select %p306, %s301, 1
        %p308 = scmp.lt.s32.totalorder %s305, 0
        %s309 = scalar_select %p308, %s305, 0
        %s310 = sadd.s32 %s309, %s307
        %s311 = smul.addr %s310, 8
        %s312 = scalar_lea.vmem %s5, %s311
        %p313 = pneg %p162
        %p314 = pneg %p159
        %p315 = pneg %p188
        %p316 = pneg %p185
        %s317 = sand.u32 %s175, 1
        %s318 = scalar_lea.sflag [#allocation11], %s317
        %s319 = sand.u32 %s175, 1
        %s320 = smul.addr %s319, 8
        %s321 = scalar_lea.vmem [#allocation12], %s320
        %p322 = scmp.lt.s32.totalorder %s35, 1
        %s323 = scalar_select %p322, %s35, 1
        %s324 = smul.addr %s323, 8
        %s325 = scalar_lea.vmem %s2, %s324
        %s326 = sld [smem:[#allocation7 + %s35]]
        %s327 = ssub.s32 %s326, 1
        %p328 = scmp.lt.s32.totalorder %s36, %s327
        %s329 = scalar_select %p328, %s36, %s327
        %s330 = smul.u32 16, %s329
        %p331 = scmp.lt.s32.totalorder %s35, 1
        %s332 = scalar_select %p331, %s35, 1
        %s333 = smul.addr %s332, 8
        %s334 = scalar_lea.vmem %s4, %s333
        %s335 = sld [smem:[#allocation8 + %s35]]
        %s336 = sld [smem:[#allocation7 + %s35]]
        %s337 = ssub.s32 %s336, 1
        %p338 = scmp.lt.s32.totalorder %s36, %s337
        %s339 = scalar_select %p338, %s36, %s337
        %p340 = scmp.lt.s32.totalorder %s335, 1
        %s341 = scalar_select %p340, %s335, 1
        %p342 = scmp.lt.s32.totalorder %s339, 0
        %s343 = scalar_select %p342, %s339, 0
        %s344 = sadd.s32 %s343, %s341
        %s345 = smul.addr %s344, 8
        %s346 = scalar_lea.vmem %s5, %s345
        %s347 = sld [smem:[#allocation8 + %s35]]
        %s348 = sld [smem:[#allocation7 + %s35]]
        %s349 = ssub.s32 %s348, 1
        %p350 = scmp.lt.s32.totalorder %s36, %s349
        %s351 = scalar_select %p350, %s36, %s349
        %s352 = sld [smem:[#allocation7 + %s35]]
        %p353 = scmp.lt.s32.totalorder %s36, %s352
        // Predicated region
        $region41: #{tpu_custom_call.1} parent=35 // pred_check
          %p354 = pneg %p353
        $region42: #{tpu_custom_call.1} parent=35 // pred_check_branch
          %356 = sbr.rel (%p354) target = $region44
        $region43: #{tpu_custom_call.1} parent=35 // pred_region
          %p357 = scmp.eq.s32.totalorder %s36, 0
          // Predicated region
          $region45: #{tpu_custom_call.1} parent=43 // pred_check
            %p358 = pneg %p357
          $region46: #{tpu_custom_call.1} parent=43 // pred_check_branch
            %360 = sbr.rel (%p358) target = $region48
          $region47: #{tpu_custom_call.1} parent=43 // pred_region
            %vm361 = vcmask 7168
            %362 = vst.msk [vmem:[#allocation2] sm:$0xff] %vm361, -3e+38
            %363 = vst.msk [vmem:[#allocation4] sm:$0xff] %vm361, -3e+38
            %364 = vst.msk [vmem:[#allocation3] sm:$0xff] %vm361, 0.0
            %365 = vst.msk [vmem:[#allocation5] sm:$0xff] %vm361, 0.0
          $region48: #{tpu_custom_call.1} parent=43 // pred_fallthru
            _
          %v366 = vld [vmem:[%s325] sm:$0xff]
          %v367 = vld [vmem:[%s277] sm:$0xff]
          %v368 = vld [vmem:[%s277 + $0x8] sm:$0xff]
          %v369 = vld [vmem:[%s277 + $0x10] sm:$0xff]
          %v370 = vld [vmem:[%s277 + $0x18] sm:$0xff]
          %v371 = vld [vmem:[%s277 + $0x20] sm:$0xff]
          %v372 = vld [vmem:[%s277 + $0x28] sm:$0xff]
          %v373 = vld [vmem:[%s277 + $0x30] sm:$0xff]
          %v374 = vld [vmem:[%s277 + $0x38] sm:$0xff]
          %v375 = vld [vmem:[%s277 + $0x40] sm:$0xff]
          %v376 = vld [vmem:[%s277 + $0x48] sm:$0xff]
          %v377 = vld [vmem:[%s277 + $0x50] sm:$0xff]
          %v378 = vld [vmem:[%s277 + $0x58] sm:$0xff]
          %v379 = vld [vmem:[%s277 + $0x60] sm:$0xff]
          %v380 = vld [vmem:[%s277 + $0x68] sm:$0xff]
          %v381 = vld [vmem:[%s277 + $0x70] sm:$0xff]
          %v382 = vld [vmem:[%s277 + $0x78] sm:$0xff]
          %383 = vmatprep.subr.mxu0 0.0
          %384 = vmatpush1.xpose.msra.mxu0 %v367
          %385 = vmatprep.subr.mxu0 0.0
          %386 = vmatpush1.xpose.msra.mxu0 %v368
          %387 = vmatprep.subr.mxu0 0.0
          %388 = vmatpush1.xpose.msra.mxu0 %v369
          %389 = vmatprep.subr.mxu0 0.0
          %390 = vmatpush1.xpose.msra.mxu0 %v370
          %391 = vmatprep.subr.mxu0 0.0
          %392 = vmatpush1.xpose.msra.mxu0 %v371
          %393 = vmatprep.subr.mxu0 0.0
          %394 = vmatpush1.xpose.msra.mxu0 %v372
          %395 = vmatprep.subr.mxu0 0.0
          %396 = vmatpush1.xpose.msra.mxu0 %v373
          %397 = vmatprep.subr.mxu0 0.0
          %398 = vmatpush1.xpose.msra.mxu0 %v374
          %399 = vmatprep.subr.mxu0 0.0
          %400 = vmatpush1.xpose.msra.mxu0 %v375
          %401 = vmatprep.subr.mxu0 0.0
          %402 = vmatpush1.xpose.msra.mxu0 %v376
          %403 = vmatprep.subr.mxu0 0.0
          %404 = vmatpush1.xpose.msra.mxu0 %v377
          %405 = vmatprep.subr.mxu0 0.0
          %406 = vmatpush1.xpose.msra.mxu0 %v378
          %407 = vmatprep.subr.mxu0 0.0
          %408 = vmatpush1.xpose.msra.mxu0 %v379
          %409 = vmatprep.subr.mxu0 0.0
          %410 = vmatpush1.xpose.msra.mxu0 %v380
          %411 = vmatprep.subr.mxu0 0.0
          %412 = vmatpush1.xpose.msra.mxu0 %v381
          %413 = vmatprep.subr.mxu0 0.0
          %414 = vmatpush1.xpose.msra.mxu0 %v382
          %415 = vmatprep.subr.mxu0 0.0
          %416 = vmatpush1.xpose.msra.mxu0 0.0
          %417 = vmatprep.subr.mxu0 0.0
          %418 = vmatpush1.xpose.msra.mxu0 0.0
          %419 = vmatprep.subr.mxu0 0.0
          %420 = vmatpush1.xpose.msra.mxu0 0.0
          %421 = vmatprep.subr.mxu0 0.0
          %422 = vmatpush1.xpose.msra.mxu0 0.0
          %423 = vmatprep.subr.mxu0 0.0
          %424 = vmatpush1.xpose.msra.mxu0 0.0
          %425 = vmatprep.subr.mxu0 0.0
          %426 = vmatpush1.xpose.msra.mxu0 0.0
          %427 = vmatprep.subr.mxu0 0.0
          %428 = vmatpush1.xpose.msra.mxu0 0.0
          %429 = vmatprep.subr.mxu0 0.0
          %430 = vmatpush1.xpose.msra.mxu0 0.0
          %431 = vmatprep.subr.mxu0 0.0
          %432 = vmatpush1.xpose.msra.mxu0 0.0
          %433 = vmatprep.subr.mxu0 0.0
          %434 = vmatpush1.xpose.msra.mxu0 0.0
          %435 = vmatprep.subr.mxu0 0.0
          %436 = vmatpush1.xpose.msra.mxu0 0.0
          %437 = vmatprep.subr.mxu0 0.0
          %438 = vmatpush1.xpose.msra.mxu0 0.0
          %439 = vmatprep.subr.mxu0 0.0
          %440 = vmatpush1.xpose.msra.mxu0 0.0
          %441 = vmatprep.subr.mxu0 0.0
          %442 = vmatpush1.xpose.msra.mxu0 0.0
          %443 = vmatprep.subr.mxu0 0.0
          %444 = vmatpush1.xpose.msra.mxu0 0.0
          %445 = vmatprep.subr.mxu0 0.0
          %446 = vmatpush1.xpose.msra.mxu0 0.0
          %447 = vmatprep.mubr.f32.mxu0 0.0
          %448 = vmatmul.mubr.f32.gmra.mrb[0].mxu0 %v366
          %v449 = vpop.f32.mrb[0].mxu0
          %v450 = vadd.f32 0.0, %v449
          %v451 = vpop.f32.mrb[0].mxu0
          %452 = vdwg.mxu0
          %v453 = vld [vmem:[%s334] sm:$0xff]
          %v454 = vld [vmem:[%s346] sm:$0x1]
          %v455 = vld [vmem:[%s346 + $0x1] sm:$0x1]
          %vm456 = vcmp.ne.f32.partialorder %v454, -2.0
          %458 = vset.pattern.permute.xlu0 0
          %459 = vperm.xlu0 %458, %v453
          %v460 = vpop.permute.xlu0 %459
          %v462 = vlaneseq
          %v463 = vshrl.u32 %v462, 7
          %v464 = vsub.s32 0, %v463
          %v465 = vrot.slane %v454, %v464
          %vm466 = vcmp.eq.f32.partialorder %v460, %v465
          %v467 = vsub.f32 1.25, %v450
          %v468 = vmax.f32 %v467, 0.0
          %v469 = vmul.f32 %v468, -128.0
          %v470 = vsub.f32 %v450, 0.75
          %v471 = vmul.f32 %v469, %v470
          %v472 = vadd.f32 %v450, 0.25
          %v473 = vmax.f32 %v472, 0.0
          %v474 = vmul.f32 %v473, 128.0
          %v475 = vsub.f32 %v450, 0.25
          %v476 = vmul.f32 %v474, %v475
          %v477 = vsel %vm466, %v471, %v476
          %v478 = vsel %vm456, 1, 0
          %v479 = vlaneseq
          %v480 = vshrl.u32 %v479, 7
          %v481 = vsub.s32 0, %v480
          %v482 = vrot.slane %v478, %v481
          %vm483 = vcmp.eq.s32.totalorder %v482, 1
          %v484 = vsel %vm483, %v477, -99999.0
          %485 = vset.pattern.permute.xlu0 1
          %486 = vperm.xlu0 %485, %v453
          %v487 = vpop.permute.xlu0 %486
          %v489 = vlaneseq
          %v490 = vshrl.u32 %v489, 7
          %v491 = vsub.s32 0, %v490
          %v492 = vrot.slane %v455, %v491
          %v493 = vadd.f32 %v487, %v492
          %v494 = vsel %vm466, %v484, -99999.0
          %495 = vmax.xlane.f32.xlu0 %v494
          %v496 = vpop.xlane.xlu0 %495
          %v497 = vsel %vm466, -99999.0, %v484
          %498 = vmax.xlane.f32.xlu0 %v497
          %v499 = vpop.xlane.xlu0 %498
          %v500 = vld [vmem:[#allocation2] sm:$0xff]
          %v501 = vmax.f32 %v500, %v496
          %v502 = vld [vmem:[#allocation4] sm:$0xff]
          %v503 = vmax.f32 %v502, %v499
          %505 = vset.pattern.permute.xlu0 0
          %506 = vperm.xlu0 %505, %v501
          %v507 = vpop.permute.xlu0 %506
          %510 = vset.pattern.permute.xlu0 0
          %511 = vperm.xlu0 %510, %v503
          %v512 = vpop.permute.xlu0 %511
          %v514 = vsel %vm466, %v507, %v512
          %v515 = vsub.f32 %v484, %v514
          %v516 = vmul.f32 %v515, 1.442695
          %v517 = vpow.pop %v516
          %v518 = vmul.f32 %v493, %v517
          %v519 = vsel %vm466, %v518, 0.0
          %520 = vadd.xlane.f32.xlu0 %v519
          %v521 = vpop.xlane.xlu0 %520
          %v522 = vsel %vm466, 0.0, %v518
          %523 = vadd.xlane.f32.xlu0 %v522
          %v524 = vpop.xlane.xlu0 %523
          %v525 = vld [vmem:[#allocation3] sm:$0xff]
          %v526 = vsub.f32 %v500, %v501
          %v527 = vmul.f32 %v526, 1.442695
          %v528 = vpow.pop %v527
          %v529 = vmul.f32 %v525, %v528
          %v530 = vadd.f32 %v529, %v521
          %vm531 = vcmask 7168
          %532 = vst.msk [vmem:[#allocation3] sm:$0xff] %vm531, %v530
          %v533 = vld [vmem:[#allocation5] sm:$0xff]
          %v534 = vld [vmem:[#allocation4] sm:$0xff]
          %v535 = vsub.f32 %v534, %v503
          %v536 = vmul.f32 %v535, 1.442695
          %v537 = vpow.pop %v536
          %v538 = vmul.f32 %v533, %v537
          %v539 = vadd.f32 %v538, %v524
          %540 = vst.msk [vmem:[#allocation5] sm:$0xff] %vm531, %v539
          %541 = vst.msk [vmem:[#allocation2] sm:$0xff] %vm531, %v501
          %542 = vst.msk [vmem:[#allocation4] sm:$0xff] %vm531, %v503
          %s543 = ssub.s32 %s352, 1
          %p544 = scmp.eq.s32.totalorder %s36, %s543
          // Predicated region
          $region49: #{tpu_custom_call.1} parent=43 // pred_check
            %p545 = pneg %p544
          $region50: #{tpu_custom_call.1} parent=43 // pred_check_branch
            %547 = sbr.rel (%p545) target = $region52
          $region51: #{tpu_custom_call.1} parent=43 // pred_region
            %v548 = vld [vmem:[#allocation2] sm:$0xff]
            %v549 = vld [vmem:[#allocation3] sm:$0xff]
            %v550 = vadd.f32 %v549, 1e-30
            %v551 = vlog2.pop %v550
            %v552 = vmul.f32 %v551, 0.6931472
            %v553 = vadd.f32 %v548, %v552
            %v554 = vld [vmem:[#allocation4] sm:$0xff]
            %v555 = vld [vmem:[#allocation5] sm:$0xff]
            %v556 = vadd.f32 %v555, 1e-30
            %v557 = vlog2.pop %v556
            %v558 = vmul.f32 %v557, 0.6931472
            %v559 = vadd.f32 %v554, %v558
            %v560 = vadd.f32 %v553, %v559
            %v561 = vmax.f32 %v560, 0.0
            %vm562 = vcmp.ne.f32.partialorder %v560, %v560
            %v563 = vadd.f32 %v560, 0.0
            %v564 = vand.u32 2147483647, %v560
            %v565 = vsub.f32 0.0, %v564
            %v566 = vmul.f32 %v565, 1.442695
            %v567 = vpow.pop %v566
            %v568 = vadd.f32 %v567, 1.0
            %v569 = vlog2.pop %v568
            %v570 = vmul.f32 %v569, 0.6931472
            %v571 = vmul.f32 -0.5, %v567
            %v572 = vadd.f32 %v571, 1.0
            %v573 = vmul.f32 %v572, %v567
            %v574 = vand.u32 2147483647, %v567
            %vm575 = vcmp.lt.f32.partialorder %v574, 0.0004427343
            %v576 = vsel %vm575, %v573, %v570
            %v577 = vadd.f32 %v561, %v576
            %v578 = vsel %vm562, %v563, %v577
            %580 = vset.pattern.permute.xlu0 0
            %581 = vperm.xlu0 %580, %v578
            %v582 = vpop.permute.xlu0 %581
            %584 = vst [vmem:[%s321] sm:$0xff] %v582
          $region52: #{tpu_custom_call.1} parent=43 // pred_fallthru
            _
        $region44: #{tpu_custom_call.1} parent=35 // pred_fallthru
          _
        %s585 = sand.u32 %s175, 1
        %s586 = scalar_lea.sflag [#allocation11], %s585
        %s587 = sand.u32 %s175, 1
        %s588 = smul.addr %s587, 8
        %s589 = scalar_lea.vmem [#allocation12], %s588
        // Predicated region
        $region53: #{tpu_custom_call.1} parent=35 // pred_check
          %p590 = pneg %p185
        $region54: #{tpu_custom_call.1} parent=35 // pred_check_branch
          %592 = sbr.rel (%p590) target = $region56
        $region55: #{tpu_custom_call.1} parent=35 // pred_region
          %s594 = ssub.s32 128, 128
          %595 = vsyncadd %s586, %s594
          %s596 = smul.addr %s35, 128
          %s597 = scalar_lea.hbm %s6, %s596
          %s599 = sshll.u32 %s589, 4
          %s600 = int_to_ptr.vmem [resolvable:$true] %s599
          %602 = dma.vmem_to_hbm [thread:$0]  %s600, 128, %s597, %s586
        $region56: #{tpu_custom_call.1} parent=35 // pred_fallthru
          _
      $region36: #{tpu_custom_call.1} parent=5 // pred_fallthru
        _
      %p603 = scmp.le.s32.totalorder 2, %s26
      // Predicated region
      $region57: #{tpu_custom_call.1} parent=5 // pred_check
        %p604 = pneg %p603
      $region58: #{tpu_custom_call.1} parent=5 // pred_check_branch
        %606 = sbr.rel (%p604) target = $region60
      $region59: #{tpu_custom_call.1} parent=5 // pred_region
        %s607 = ssub.s32 %s26, 2
        // Predicated region
        $region61: #{tpu_custom_call.1} parent=59 // pred_check
          %p608 = pneg %p191
        $region62: #{tpu_custom_call.1} parent=59 // pred_check_branch
          %610 = sbr.rel (%p608) target = $region64
        $region63: #{tpu_custom_call.1} parent=59 // pred_region
          %s611 = sand.u32 %s176, 1
          %s612 = scalar_lea.sflag [#allocation11], %s611
          %s613 = sand.u32 %s176, 1
          %s614 = smul.addr %s613, 8
          %s615 = scalar_lea.vmem [#allocation12], %s614
          %616 = dma.done %s612, 128
        $region64: #{tpu_custom_call.1} parent=59 // pred_fallthru
          _
      $region60: #{tpu_custom_call.1} parent=5 // pred_fallthru
        _
    $region6: #{tpu_custom_call.1} parent=1 // loop_footer
      %s30 = sadd.s32 1, %s26
    $region7: #{tpu_custom_call.1} parent=1 // loop_footer_branch
      %25 = sbr.rel target = $region3
    $region8: #{tpu_custom_call.1} parent=1 // loop_exit
      _
    %617 = vsyncpa [#allocation10], 1
    %s618 = scalar_lea.sflag [#allocation10], 1
    %619 = vsyncpa %s618, 1
    %620 = vsyncpa [#allocation11], 1
    %s621 = scalar_lea.sflag [#allocation11], 1
    %622 = vsyncpa %s621, 1

</llo_original>
